<compile_context>
chip_gen: v7x
topology: tpu7x:2x2x1
jax: 0.10.0
libtpu: 0.0.40
codegen_flags: <defaults>
</compile_context>

<pallas_src>
import functools
import math

import jax
import jax.numpy as jnp
from jax import lax
from jax.experimental import pallas as pl
from jax.experimental.pallas import tpu as pltpu

_VMEM_LIMIT = 32 * 1024 * 1024  # conservative for v7x (64 MiB/TC physical)


def _pick_tile(dim, target, align):
    """Largest tile <= target that is a multiple of `align` and divides `dim`.

    Falls back to the full dimension (always a legal block shape)."""
    if dim <= target:
        return dim
    t = (target // align) * align
    while t >= align:
        if dim % t == 0:
            return t
        t -= align
    return dim


# ----------------------------------------------------------------------------
# Tiled linear kernel:  y = x @ W + b, bf16 MXU operands, f32 accumulation.
# Shared body for the 2-D-weight case and the stacked (3, K, N) QKV case
# (the reduction grid axis index is passed in via `k_axis`).
# ----------------------------------------------------------------------------
def _linear_kernel(x_ref, w_ref, b_ref, o_ref, acc_ref, *, k_axis):
    k = pl.program_id(k_axis)

    @pl.when(k == 0)
    def _init():
        acc_ref[...] = jnp.zeros_like(acc_ref)

    acc_ref[...] += jnp.dot(
        x_ref[...].astype(jnp.bfloat16),
        w_ref[...].astype(jnp.bfloat16),
        preferred_element_type=jnp.float32,
    )

    @pl.when(k == pl.num_programs(k_axis) - 1)
    def _finalize():
        o_ref[...] = (acc_ref[...] + b_ref[...]).astype(o_ref.dtype)


def linear_pallas(x, w, b, *, tm_target=256, tn_target=256, tk_target=512):
    """x: (M, K), w: (K, N), b: (1, N) -> (M, N) float32."""
    M, K = x.shape
    N = w.shape[1]
    tm = _pick_tile(M, tm_target, 8)
    tn = _pick_tile(N, tn_target, 128)
    tk = _pick_tile(K, tk_target, 128)
    grid = (M // tm, N // tn, K // tk)
    kernel = functools.partial(_linear_kernel, k_axis=2)
    return pl.pallas_call(
        kernel,
        out_shape=jax.ShapeDtypeStruct((M, N), jnp.float32),
        grid=grid,
        in_specs=[
            pl.BlockSpec((tm, tk), lambda i, j, k: (i, k)),
            pl.BlockSpec((tk, tn), lambda i, j, k: (k, j)),
            pl.BlockSpec((1, tn), lambda i, j, k: (0, j)),
        ],
        out_specs=pl.BlockSpec((tm, tn), lambda i, j, k: (i, j)),
        scratch_shapes=[pltpu.VMEM((tm, tn), jnp.float32)],
        compiler_params=pltpu.CompilerParams(
            dimension_semantics=("parallel", "parallel", "arbitrary"),
            vmem_limit_bytes=_VMEM_LIMIT,
        ),
    )(x, w, b)


def qkv_projection_fused(x, w_stacked, b_stacked, *, tm_target=256,
                         tn_target=256, tk_target=512):
    """x: (M, K), w_stacked: (3, K, N), b_stacked: (3, 1, N) -> (3, M, N) f32.

    One pallas_call for all three projections (leading grid axis selects
    which weight matrix); the stacked output feeds the attention kernel
    directly via its index_map (no slicing copies, no transposes)."""
    M, K = x.shape
    N = w_stacked.shape[2]
    tm = _pick_tile(M, tm_target, 8)
    tn = _pick_tile(N, tn_target, 128)
    tk = _pick_tile(K, tk_target, 128)
    grid = (3, M // tm, N // tn, K // tk)
    kernel = functools.partial(_linear_kernel, k_axis=3)
    return pl.pallas_call(
        kernel,
        out_shape=jax.ShapeDtypeStruct((3, M, N), jnp.float32),
        grid=grid,
        in_specs=[
            pl.BlockSpec((tm, tk), lambda s, i, j, k: (i, k)),
            pl.BlockSpec((None, tk, tn), lambda s, i, j, k: (s, k, j)),
            pl.BlockSpec((None, 1, tn), lambda s, i, j, k: (s, 0, j)),
        ],
        out_specs=pl.BlockSpec((None, tm, tn), lambda s, i, j, k: (s, i, j)),
        scratch_shapes=[pltpu.VMEM((tm, tn), jnp.float32)],
        compiler_params=pltpu.CompilerParams(
            dimension_semantics=("parallel", "parallel", "parallel", "arbitrary"),
            vmem_limit_bytes=_VMEM_LIMIT,
        ),
    )(x, w_stacked, b_stacked)


# ----------------------------------------------------------------------------
# Flash-style multi-head attention kernel.
#   grid = (batch, q_tiles, kv_tiles), kv axis is the online-softmax reduction.
#   q/k/v blocks are (q or kv tile, hidden); heads are lane slices inside.
#   bias is an additive f32 mask (0 / -1e9); 1/sqrt(D) already folded into W_Q.
# ----------------------------------------------------------------------------
def _flash_mha_kernel(q_ref, k_ref, v_ref, bias_ref, o_ref,
                      m_scr, l_scr, acc_scr, *, n_heads, head_dim):
    kv_i = pl.program_id(2)

    @pl.when(kv_i == 0)
    def _init():
        m_scr[...] = jnp.full_like(m_scr, -jnp.inf)
        l_scr[...] = jnp.zeros_like(l_scr)
        acc_scr[...] = jnp.zeros_like(acc_scr)

    bias = bias_ref[0]  # (tq, tkv) f32 additive mask

    for h in range(n_heads):
        sl = slice(h * head_dim, (h + 1) * head_dim)
        qh = q_ref[0, :, sl].astype(jnp.bfloat16)      # (tq, D)
        kh = k_ref[0, :, sl].astype(jnp.bfloat16)      # (tkv, D)
        vh = v_ref[0, :, sl].astype(jnp.bfloat16)      # (tkv, D)

        # scores (scale already folded into W_Q); f32 MXU accumulation
        s = lax.dot_general(qh, kh, (((1,), (1,)), ((), ())),
                            preferred_element_type=jnp.float32)  # (tq, tkv)
        s = s + bias

        m_prev = m_scr[h]                                          # (tq, 1)
        m_new = jnp.maximum(m_prev, jnp.max(s, axis=-1, keepdims=True))
        alpha = jnp.exp(m_prev - m_new)                            # (tq, 1)
        p = jnp.exp(s - m_new)                                     # (tq, tkv) f32

        l_scr[h] = alpha * l_scr[h] + jnp.sum(p, axis=-1, keepdims=True)
        pv = jnp.dot(p.astype(jnp.bfloat16), vh,
                     preferred_element_type=jnp.float32)           # (tq, D)
        acc_scr[:, sl] = alpha * acc_scr[:, sl] + pv
        m_scr[h] = m_new

    @pl.when(kv_i == pl.num_programs(2) - 1)
    def _finalize():
        for h in range(n_heads):
            sl = slice(h * head_dim, (h + 1) * head_dim)
            inv = pl.reciprocal(l_scr[h], approx=True)             # (tq, 1)
            o_ref[0, :, sl] = (acc_scr[:, sl] * inv).astype(o_ref.dtype)


def flash_attention_pallas(q4, k4, v4, q_sel, k_sel, v_sel, bias, n_heads,
                           *, tq_target=128, tkv_target=128):
    """q4/k4/v4: (L, B, S, H) arrays (possibly the same stacked QKV array);
    *_sel: leading-axis index selecting q/k/v; bias: (B, Sq, Skv) f32 additive.
    Returns (B, Sq, H) f32."""
    _, B, Sq, H = q4.shape
    Skv = k4.shape[2]
    D = H // n_heads
    tq = _pick_tile(Sq, tq_target, 8)
    tkv = _pick_tile(Skv, tkv_target, 128)
    grid = (B, Sq // tq, Skv // tkv)
    kernel = functools.partial(_flash_mha_kernel, n_heads=n_heads, head_dim=D)
    return pl.pallas_call(
        kernel,
        out_shape=jax.ShapeDtypeStruct((B, Sq, H), jnp.float32),
        grid=grid,
        in_specs=[
            pl.BlockSpec((None, 1, tq, H), lambda b, iq, ik: (q_sel, b, iq, 0)),
            pl.BlockSpec((None, 1, tkv, H), lambda b, iq, ik: (k_sel, b, ik, 0)),
            pl.BlockSpec((None, 1, tkv, H), lambda b, iq, ik: (v_sel, b, ik, 0)),
            pl.BlockSpec((1, tq, tkv), lambda b, iq, ik: (b, iq, ik)),
        ],
        out_specs=pl.BlockSpec((1, tq, H), lambda b, iq, ik: (b, iq, 0)),
        scratch_shapes=[
            pltpu.VMEM((n_heads, tq, 1), jnp.float32),   # running max m_i
            pltpu.VMEM((n_heads, tq, 1), jnp.float32),   # running denom l_i
            pltpu.VMEM((tq, H), jnp.float32),            # output accumulator
        ],
        compiler_params=pltpu.CompilerParams(
            dimension_semantics=("parallel", "parallel", "arbitrary"),
            vmem_limit_bytes=_VMEM_LIMIT,
        ),
    )(q4, k4, v4, bias)


# ----------------------------------------------------------------------------
# MultiHeadAttention forward
# ----------------------------------------------------------------------------
def multi_head_attention(params, query, key, value, attn_mask, n_heads):
    """query/key/value: (B, S, hidden) f32; attn_mask: (B, Sq, Skv) bool (True = masked)."""
    B, Sq, H = query.shape
    assert H % n_heads == 0
    D = H // n_heads
    inv_scale = 1.0 / math.sqrt(D)

    # Additive mask bias (0 / -1e9): one add in-kernel instead of compare+select.
    additive_bias = jnp.where(attn_mask, jnp.float32(-1e9), jnp.float32(0.0))

    if (key is query) and (value is query):
        # Self-attention fast path: single fused QKV projection.
        w_stk = jnp.stack([params["wq"] * inv_scale, params["wk"], params["wv"]], axis=0)
        b_stk = jnp.stack([params["bq"] * inv_scale, params["bk"], params["bv"]], axis=0)
        qkv = qkv_projection_fused(query.reshape(B * Sq, H), w_stk, b_stk)  # (3, B*Sq, H)
        qkv = qkv.reshape(3, B, Sq, H)
        ctx = flash_attention_pallas(qkv, qkv, qkv, 0, 1, 2, additive_bias, n_heads)
    else:
        Skv = key.shape[1]
        q = linear_pallas(query.reshape(B * Sq, H),
                          params["wq"] * inv_scale, params["bq"] * inv_scale)
        k = linear_pallas(key.reshape(B * Skv, H), params["wk"], params["bk"])
        v = linear_pallas(value.reshape(B * Skv, H), params["wv"], params["bv"])
        ctx = flash_attention_pallas(q.reshape(1, B, Sq, H),
                                     k.reshape(1, B, Skv, H),
                                     v.reshape(1, B, Skv, H),
                                     0, 0, 0, additive_bias, n_heads)

    out = linear_pallas(ctx.reshape(B * Sq, H), params["wo"], params["bo"])
    # dropout rate = 0 -> identity
    return out.reshape(B, Sq, H)


def init_params(key, hidden_dim):
    """Deterministic PyTorch-Linear-style init: U(-1/sqrt(fan_in), 1/sqrt(fan_in))."""
    ks = jax.random.split(key, 8)
    bound = 1.0 / math.sqrt(hidden_dim)

    def u(k, shape):
        return jax.random.uniform(k, shape, jnp.float32, -bound, bound)

    # Weights stored as (in, out) so kernels compute x @ W + b.
    return {
        "wq": u(ks[0], (hidden_dim, hidden_dim)), "bq": u(ks[1], (1, hidden_dim)),
        "wk": u(ks[2], (hidden_dim, hidden_dim)), "bk": u(ks[3], (1, hidden_dim)),
        "wv": u(ks[4], (hidden_dim, hidden_dim)), "bv": u(ks[5], (1, hidden_dim)),
        "wo": u(ks[6], (hidden_dim, hidden_dim)), "bo": u(ks[7], (1, hidden_dim)),
    }


# ----------------------------------------------------------------------------
# Pure-JAX reference mirroring the kernel's numeric path (bf16 matmul operands,
# f32 accumulation, additive mask bias, scale folded into W_Q).
# ----------------------------------------------------------------------------
def _bf16_matmul(a, b):
    return jnp.dot(a.astype(jnp.bfloat16), b.astype(jnp.bfloat16),
                   preferred_element_type=jnp.float32)


def reference_mha(params, query, key, value, attn_mask, n_heads):
    B, Sq, H = query.shape
    Skv = key.shape[1]
    D = H // n_heads
    inv_scale = 1.0 / math.sqrt(D)

    q = _bf16_matmul(query.reshape(B * Sq, H), params["wq"] * inv_scale) + params["bq"][0] * inv_scale
    k = _bf16_matmul(key.reshape(B * Skv, H), params["wk"]) + params["bk"][0]
    v = _bf16_matmul(value.reshape(B * Skv, H), params["wv"]) + params["bv"][0]

    q = q.reshape(B, Sq, n_heads, D).transpose(0, 2, 1, 3)
    k = k.reshape(B, Skv, n_heads, D).transpose(0, 2, 1, 3)
    v = v.reshape(B, Skv, n_heads, D).transpose(0, 2, 1, 3)

    s = jnp.einsum("bhqd,bhkd->bhqk", q.astype(jnp.bfloat16), k.astype(jnp.bfloat16),
                   preferred_element_type=jnp.float32)
    bias = jnp.where(attn_mask, jnp.float32(-1e9), jnp.float32(0.0))
    s = s + bias[:, None]
    p = jax.nn.softmax(s, axis=-1)
    ctx = jnp.einsum("bhqk,bhkd->bhqd", p.astype(jnp.bfloat16), v.astype(jnp.bfloat16),
                     preferred_element_type=jnp.float32)
    ctx = ctx.transpose(0, 2, 1, 3).reshape(B * Sq, H)
    out = _bf16_matmul(ctx, params["wo"]) + params["bo"][0]
    return out.reshape(B, Sq, H)


if __name__ == "__main__":
    B, S, HIDDEN, N_HEADS = 2, 8, 32, 4

    root = jax.random.PRNGKey(0)
    k_par, k_x, k_k, k_v, k_m = jax.random.split(root, 5)

    params = init_params(k_par, HIDDEN)
    x = jax.random.normal(k_x, (B, S, HIDDEN), jnp.float32)
    key_t = jax.random.normal(k_k, (B, S, HIDDEN), jnp.float32)
    value_t = jax.random.normal(k_v, (B, S, HIDDEN), jnp.float32)
    attn_mask = jax.random.bernoulli(k_m, 0.2, (B, S, S))  # True = masked out

    # Self-attention (exercises the fused stacked-QKV path).
    out_self = jax.block_until_ready(
        multi_head_attention(params, x, x, x, attn_mask, N_HEADS))
    exp_self = reference_mha(params, x, x, x, attn_mask, N_HEADS)
    assert jnp.allclose(out_self, exp_self, atol=2e-2, rtol=2e-2), "self-attn mismatch"

    # Cross-attention (separate-projection path).
    out_cross = jax.block_until_ready(
        multi_head_attention(params, x, key_t, value_t, attn_mask, N_HEADS))
    exp_cross = reference_mha(params, x, key_t, value_t, attn_mask, N_HEADS)
    assert jnp.allclose(out_cross, exp_cross, atol=2e-2, rtol=2e-2), "cross-attn mismatch"

    print("KERNEL_OK")
</pallas_src>

<mosaic_0001>
module attributes {stable_mosaic.version = 11 : i64} {
  func.func @_linear_kernel(%arg0: i32, %arg1: i32, %arg2: i32, %arg3: i32, %arg4: memref<16x32xf32, #tpu.memory_space<vmem>>, %arg5: memref<1x32x32xf32, #tpu.memory_space<vmem>>, %arg6: memref<1x1x32xf32, #tpu.memory_space<vmem>>, %arg7: memref<1x16x32xf32, #tpu.memory_space<vmem>>, %arg8: memref<16x32xf32, #tpu.memory_space<vmem>>) attributes {dimension_semantics = [#tpu.dimension_semantics<parallel>, #tpu.dimension_semantics<parallel>, #tpu.dimension_semantics<parallel>, #tpu.dimension_semantics<arbitrary>], iteration_bounds = array<i64: 3, 1, 1, 1>, scalar_prefetch = 0 : i64, scratch_operands = 1 : i64, tpu.core_type = #tpu.core_type<tc>, window_params = [{transform_indices = @transform_0, window_bounds = array<i64: 16, 32>}, {transform_indices = @transform_1, window_bounds = array<i64: 1, 32, 32>}, {transform_indices = @transform_2, window_bounds = array<i64: 1, 1, 32>}, {transform_indices = @transform_3, window_bounds = array<i64: 1, 16, 32>}]} {
    %c0_i32 = arith.constant 0 : i32
    %0 = arith.cmpi eq, %arg3, %c0_i32 : i32
    %1 = arith.extui %0 : i1 to i32
    %c0_i32_0 = arith.constant 0 : i32
    %2 = arith.cmpi ne, %1, %c0_i32_0 : i32
    scf.if %2 {
      %cst_11 = arith.constant 0.000000e+00 : f32
      %15 = vector.broadcast %cst_11 : f32 to vector<16x32xf32>
      %c0_12 = arith.constant 0 : index
      %c0_13 = arith.constant 0 : index
      %16 = vector.load %arg8[%c0_12, %c0_13] : memref<16x32xf32, #tpu.memory_space<vmem>>, vector<16x32xf32>
      tpu.vector_store %arg8[%c0_12, %c0_13], %15 {strides = array<i32>} : memref<16x32xf32, #tpu.memory_space<vmem>>, vector<16x32xf32>,
    } else {
    }
    %c0 = arith.constant 0 : index
    %c0_1 = arith.constant 0 : index
    %3 = vector.load %arg8[%c0, %c0_1] : memref<16x32xf32, #tpu.memory_space<vmem>>, vector<16x32xf32>
    %c0_2 = arith.constant 0 : index
    %c0_3 = arith.constant 0 : index
    %4 = vector.load %arg4[%c0_2, %c0_3] : memref<16x32xf32, #tpu.memory_space<vmem>>, vector<16x32xf32>
    %5 = arith.truncf %4 : vector<16x32xf32> to vector<16x32xbf16>
    %c0_4 = arith.constant 0 : index
    %c0_5 = arith.constant 0 : index
    %c0_6 = arith.constant 0 : index
    %6 = vector.load %arg5[%c0_4, %c0_5, %c0_6] : memref<1x32x32xf32, #tpu.memory_space<vmem>>, vector<1x32x32xf32>
    %7 = vector.shape_cast %6 : vector<1x32x32xf32> to vector<32x32xf32>
    %8 = arith.truncf %7 : vector<32x32xf32> to vector<32x32xbf16>
    %cst = arith.constant dense<0.000000e+00> : vector<16x32xf32>
    %9 = tpu.matmul %5, %8, %cst {dimension_numbers = #tpu.dot_dimension_numbers<[1], [0], [0], [1], [0, 0, 1, 1], [], []>} : vector<16x32xbf16>, vector<32x32xbf16>, vector<16x32xf32> -> vector<16x32xf32>
    %10 = arith.addf %3, %9 : vector<16x32xf32>
    %c0_7 = arith.constant 0 : index
    %c0_8 = arith.constant 0 : index
    %11 = vector.load %arg8[%c0_7, %c0_8] : memref<16x32xf32, #tpu.memory_space<vmem>>, vector<16x32xf32>
    tpu.vector_store %arg8[%c0_7, %c0_8], %10 {strides = array<i32>} : memref<16x32xf32, #tpu.memory_space<vmem>>, vector<16x32xf32>,
    %c0_i32_9 = arith.constant 0 : i32
    %12 = arith.cmpi eq, %arg3, %c0_i32_9 : i32
    %13 = arith.extui %12 : i1 to i32
    %c0_i32_10 = arith.constant 0 : i32
    %14 = arith.cmpi ne, %13, %c0_i32_10 : i32
    scf.if %14 {
      %c0_11 = arith.constant 0 : index
      %c0_12 = arith.constant 0 : index
      %15 = vector.load %arg8[%c0_11, %c0_12] : memref<16x32xf32, #tpu.memory_space<vmem>>, vector<16x32xf32>
      %c0_13 = arith.constant 0 : index
      %c0_14 = arith.constant 0 : index
      %c0_15 = arith.constant 0 : index
      %16 = vector.load %arg6[%c0_13, %c0_14, %c0_15] : memref<1x1x32xf32, #tpu.memory_space<vmem>>, vector<1x1x32xf32>
      %17 = vector.shape_cast %16 : vector<1x1x32xf32> to vector<1x32xf32>
      %18 = vector.broadcast %17 : vector<1x32xf32> to vector<16x32xf32>
      %19 = arith.addf %15, %18 : vector<16x32xf32>
      %c0_16 = arith.constant 0 : index
      %c0_17 = arith.constant 0 : index
      %c0_18 = arith.constant 0 : index
      %20 = vector.load %arg7[%c0_16, %c0_17, %c0_18] : memref<1x16x32xf32, #tpu.memory_space<vmem>>, vector<1x16x32xf32>
      %21 = vector.shape_cast %20 : vector<1x16x32xf32> to vector<16x32xf32>
      %22 = vector.shape_cast %19 : vector<16x32xf32> to vector<1x16x32xf32>
      tpu.vector_store %arg7[%c0_16, %c0_17, %c0_18], %22 {strides = array<i32>} : memref<1x16x32xf32, #tpu.memory_space<vmem>>, vector<1x16x32xf32>,
    } else {
    }
    return
  }
  func.func @transform_0(%arg0: i32, %arg1: i32, %arg2: i32, %arg3: i32) -> (i32, i32) {
    %c0_i32 = arith.constant 0 : i32
    return %arg1, %arg3 : i32, i32
  }
  func.func @transform_1(%arg0: i32, %arg1: i32, %arg2: i32, %arg3: i32) -> (i32, i32, i32) {
    %c0_i32 = arith.constant 0 : i32
    return %arg0, %arg3, %arg2 : i32, i32, i32
  }
  func.func @transform_2(%arg0: i32, %arg1: i32, %arg2: i32, %arg3: i32) -> (i32, i32, i32) {
    %c0_i32 = arith.constant 0 : i32
    %c0_i32_0 = arith.constant 0 : i32
    return %arg0, %c0_i32, %arg2 : i32, i32, i32
  }
  func.func @transform_3(%arg0: i32, %arg1: i32, %arg2: i32, %arg3: i32) -> (i32, i32, i32) {
    %c0_i32 = arith.constant 0 : i32
    return %arg0, %arg1, %arg2 : i32, i32, i32
  }
}

</mosaic_0001>

<llo_original>
// kernel: tpu_custom_call.1
$region0: #{tpu_custom_call.1}
  #allocation0 [shape = 'u32[]', space=smem, size = 0x4, offset = 0x4, fixed_abs, tag = 'smem constant byte address 0x4 - core index']
  #allocation1 [shape = 'u32[144,128]{1,0:T(1,128)}', space=vmem, size = 0x12000, scoped, tag = 'internal scratch']
  #allocation2 [shape = 'f32[16,32]{1,0:T(8,128)}', space=vmem, size = 0x2000, scoped, tag = 'scratch operand']
  %s0 = inlined_call_operand.hbm [shape: f32[16,32], index: 0, kind: input, shape index: {}]
  %s1 = inlined_call_operand.hbm [shape: f32[3,32,32], index: 1, kind: input, shape index: {}]
  %s2 = inlined_call_operand.vmem [shape: f32[3,1,32], index: 2, kind: input, shape index: {}]
  %s3 = inlined_call_operand.hbm [shape: f32[3,16,32], index: 3, kind: output, shape index: {}]
  %s4 = sld [smem:[#allocation0]]
  $region61: #{tpu_custom_call.1} parent=0
    _
  %s6 = ssub.s32 1, %s4
  %s7 = scalar_select 0, %s6, %s4
  $region1: #{tpu_custom_call.1} parent=0
    #allocation3 [shape = 'u8[8192]{0}', space=vmem, size = 0x2000, scoped, tag = 'input window, operand 0, single buffered']
    #allocation4 [shape = 's32[2]{0}', space=sflag, size = 0x8, scoped, tag = 'scoped memory for tpu_custom_call.1']
    #allocation5 [shape = 's32[2]{0}', space=sflag, size = 0x8, scoped, tag = 'scoped memory for tpu_custom_call.1']
    #allocation6 [shape = 'u8[32768]{0}', space=vmem, size = 0x8000, scoped, tag = 'input window, operand 1']
    #allocation7 [shape = 's32[2]{0}', space=sflag, size = 0x8, scoped, tag = 'scoped memory for tpu_custom_call.1']
    #allocation8 [shape = 'u8[16384]{0}', space=vmem, size = 0x4000, scoped, tag = 'output window, operand 0']
    %8 = vsyncpa [#allocation4], 0
    %9 = vsyncpa [#allocation7], 0
    %s10 = scalar_lea.sflag [#allocation7], 1
    %11 = vsyncpa %s10, 0
    %12 = vsyncpa [#allocation5], 0
    %s13 = scalar_lea.sflag [#allocation5], 1
    %14 = vsyncpa %s13, 0
    loop: start=0, step=1, limit=5
    $region2: #{tpu_custom_call.1} parent=1 // loop_pre_header
      _
    $region3: #{tpu_custom_call.1} parent=1 // loop_header
      %s16 = sphi 0, %s20
      %p17 = scmp.ge.s32.totalorder %s16, 5
      %s23 = sphi 0, %s49
      %s24 = sphi 0, %s45
      %s25 = sphi 0, %s41
      %s26 = sphi 0, %s37
      %s27 = sphi 0, %s23
      %s28 = sphi 0, %s24
      %s29 = sphi 0, %s25
      %s30 = sphi 0, %s26
      %s31 = sphi 0, %s27
      %s32 = sphi 0, %s28
      %s33 = sphi 0, %s29
      %s34 = sphi 0, %s30
      %s54 = sphi 0, %s56
      %s57 = sphi 0, %s54
      %s58 = sphi 0, %s57
      %s74 = sphi 0, %s58
      %s84 = sphi 0, %s86
      %s87 = sphi 0, %s84
      %s88 = sphi 0, %s87
      %s104 = sphi 0, %s88
      %s112 = sphi 0, %s114
      %s115 = sphi 0, %s112
      %s116 = sphi 0, %s115
      %s132 = sphi 0, %s116
      %s142 = sphi 0, %s144
      %s145 = sphi 0, %s142
      %s146 = sphi 0, %s145
      %s162 = sphi 0, %s146
    $region4: #{tpu_custom_call.1} parent=1 // loop_header_branch
      %19 = sbr.rel (%p17) target = $region8
    $region5: #{tpu_custom_call.1} parent=1 // loop_body
      %s21 = ssub.s32 %s16, 1
      %s22 = ssub.s32 %s16, 2
      %s35 = sadd.s32 1, %s26
      %p36 = scmp.ge.s32.totalorder %s35, 1
      %s37 = scalar_select %p36, 0, %s35
      %s38 = sadd.s32 1, %s25
      %s39 = scalar_select %p36, %s38, %s25
      %p40 = scmp.ge.s32.totalorder %s39, 1
      %s41 = scalar_select %p40, 0, %s39
      %s42 = sadd.s32 1, %s24
      %s43 = scalar_select %p40, %s42, %s24
      %p44 = scmp.ge.s32.totalorder %s43, 1
      %s45 = scalar_select %p44, 0, %s43
      %s46 = sadd.s32 1, %s23
      %s47 = scalar_select %p44, %s46, %s23
      %p48 = scmp.ge.s32.totalorder %s47, 3
      %s49 = scalar_select %p48, 0, %s47
      %s50 = ssub.s32 %s24, %s45
      %s51 = ssub.s32 %s26, %s37
      %s52 = sor.u32 %s50, %s51
      %p53 = scmp.eq.s32.totalorder %s52, 0
      %s55 = sadd.s32 %s54, 1
      %s56 = scalar_select %p53, %s54, %s55
      %p59 = pneg %p53
      %p60 = scmp.eq.s32.totalorder %s16, 2
      %p61 = por %p59, %p60
      %p62 = scmp.ne.s32.totalorder %s54, %s57
      %p63 = scmp.eq.s32.totalorder %s16, 0
      %p64 = por %p62, %p63
      %p65 = scmp.ne.s32.totalorder %s54, %s57
      %p66 = scmp.eq.s32.totalorder %s21, 2
      %p67 = por %p65, %p66
      %p68 = scmp.ne.s32.totalorder %s57, %s58
      %p69 = scmp.eq.s32.totalorder %s21, 0
      %p70 = por %p68, %p69
      %p71 = scmp.ne.s32.totalorder %s57, %s58
      %p72 = scmp.eq.s32.totalorder %s22, 2
      %p73 = por %p71, %p72
      %p75 = scmp.ne.s32.totalorder %s58, %s74
      %p76 = scmp.eq.s32.totalorder %s22, 0
      %p77 = por %p75, %p76
      %s78 = ssub.s32 %s23, %s49
      %s79 = ssub.s32 %s26, %s37
      %s80 = sor.u32 %s78, %s79
      %s81 = ssub.s32 %s25, %s41
      %s82 = sor.u32 %s80, %s81
      %p83 = scmp.eq.s32.totalorder %s82, 0
      %s85 = sadd.s32 %s84, 1
      %s86 = scalar_select %p83, %s84, %s85
      %p89 = pneg %p83
      %p90 = scmp.eq.s32.totalorder %s16, 2
      %p91 = por %p89, %p90
      %p92 = scmp.ne.s32.totalorder %s84, %s87
      %p93 = scmp.eq.s32.totalorder %s16, 0
      %p94 = por %p92, %p93
      %p95 = scmp.ne.s32.totalorder %s84, %s87
      %p96 = scmp.eq.s32.totalorder %s21, 2
      %p97 = por %p95, %p96
      %p98 = scmp.ne.s32.totalorder %s87, %s88
      %p99 = scmp.eq.s32.totalorder %s21, 0
      %p100 = por %p98, %p99
      %p101 = scmp.ne.s32.totalorder %s87, %s88
      %p102 = scmp.eq.s32.totalorder %s22, 2
      %p103 = por %p101, %p102
      %p105 = scmp.ne.s32.totalorder %s88, %s104
      %p106 = scmp.eq.s32.totalorder %s22, 0
      %p107 = por %p105, %p106
      %s108 = ssub.s32 %s23, %s49
      %s109 = ssub.s32 %s25, %s41
      %s110 = sor.u32 %s108, %s109
      %p111 = scmp.eq.s32.totalorder %s110, 0
      %s113 = sadd.s32 %s112, 1
      %s114 = scalar_select %p111, %s112, %s113
      %p117 = pneg %p111
      %p118 = scmp.eq.s32.totalorder %s16, 2
      %p119 = por %p117, %p118
      %p120 = scmp.ne.s32.totalorder %s112, %s115
      %p121 = scmp.eq.s32.totalorder %s16, 0
      %p122 = por %p120, %p121
      %p123 = scmp.ne.s32.totalorder %s112, %s115
      %p124 = scmp.eq.s32.totalorder %s21, 2
      %p125 = por %p123, %p124
      %p126 = scmp.ne.s32.totalorder %s115, %s116
      %p127 = scmp.eq.s32.totalorder %s21, 0
      %p128 = por %p126, %p127
      %p129 = scmp.ne.s32.totalorder %s115, %s116
      %p130 = scmp.eq.s32.totalorder %s22, 2
      %p131 = por %p129, %p130
      %p133 = scmp.ne.s32.totalorder %s116, %s132
      %p134 = scmp.eq.s32.totalorder %s22, 0
      %p135 = por %p133, %p134
      %s136 = ssub.s32 %s23, %s49
      %s137 = ssub.s32 %s24, %s45
      %s138 = sor.u32 %s136, %s137
      %s139 = ssub.s32 %s25, %s41
      %s140 = sor.u32 %s138, %s139
      %p141 = scmp.eq.s32.totalorder %s140, 0
      %s143 = sadd.s32 %s142, 1
      %s144 = scalar_select %p141, %s142, %s143
      %p147 = pneg %p141
      %p148 = scmp.eq.s32.totalorder %s16, 2
      %p149 = por %p147, %p148
      %p150 = scmp.ne.s32.totalorder %s142, %s145
      %p151 = scmp.eq.s32.totalorder %s16, 0
      %p152 = por %p150, %p151
      %p153 = scmp.ne.s32.totalorder %s142, %s145
      %p154 = scmp.eq.s32.totalorder %s21, 2
      %p155 = por %p153, %p154
      %p156 = scmp.ne.s32.totalorder %s145, %s146
      %p157 = scmp.eq.s32.totalorder %s21, 0
      %p158 = por %p156, %p157
      %p159 = scmp.ne.s32.totalorder %s145, %s146
      %p160 = scmp.eq.s32.totalorder %s22, 2
      %p161 = por %p159, %p160
      %p163 = scmp.ne.s32.totalorder %s146, %s162
      %p164 = scmp.eq.s32.totalorder %s22, 0
      %p165 = por %p163, %p164
      %p166 = scmp.le.s32.totalorder 1, %s16
      %p167 = scmp.lt.s32.totalorder %s16, 4
      %p168 = pnand %p166, %p167
      %p169 = pneg %p168
      // Predicated region
      $region9: #{tpu_custom_call.1} parent=5 // pred_check
        _
      $region10: #{tpu_custom_call.1} parent=5 // pred_check_branch
        %171 = sbr.rel (%p168) target = $region12
      $region11: #{tpu_custom_call.1} parent=5 // pred_region
        %s172 = ssub.s32 %s16, 1
        // Predicated region
        $region13: #{tpu_custom_call.1} parent=11 // pred_check
          %p173 = pneg %p70
        $region14: #{tpu_custom_call.1} parent=11 // pred_check_branch
          %175 = sbr.rel (%p173) target = $region16
        $region15: #{tpu_custom_call.1} parent=11 // pred_region
          %s176 = smul.u32 2, %s28
          %s178 = ssub.s32 256, 256
          %179 = vsyncadd [#allocation4], %s178
          %s180 = sadd.s32 %s30, %s176
          %s181 = smul.addr %s180, 128
          %s182 = scalar_lea.hbm %s0, %s181
          %s183 = sshll.u32 [#allocation3], 4
          %s184 = int_to_ptr.vmem [resolvable:$true] %s183
          %189 = dma.hbm_to_vmem [thread:$0]  %s182, 256, %s184, [#allocation4], 128, 128, 8
        $region16: #{tpu_custom_call.1} parent=11 // pred_fallthru
          _
      $region12: #{tpu_custom_call.1} parent=5 // pred_fallthru
        _
      %p190 = scmp.lt.s32.totalorder %s16, 3
      // Predicated region
      $region17: #{tpu_custom_call.1} parent=5 // pred_check
        %p191 = pneg %p190
      $region18: #{tpu_custom_call.1} parent=5 // pred_check_branch
        %193 = sbr.rel (%p191) target = $region20
      $region19: #{tpu_custom_call.1} parent=5 // pred_region
        // Predicated region
        $region21: #{tpu_custom_call.1} parent=19 // pred_check
          %p194 = pneg %p94
        $region22: #{tpu_custom_call.1} parent=19 // pred_check_branch
          %196 = sbr.rel (%p194) target = $region24
        $region23: #{tpu_custom_call.1} parent=19 // pred_region
          %s197 = sand.u32 %s84, 1
          %s198 = scalar_lea.sflag [#allocation7], %s197
          %s199 = sand.u32 %s84, 1
          %s200 = smul.addr %s199, 32
          %s201 = scalar_lea.vmem [#allocation6], %s200
          %s202 = smul.u32 4, %s26
          %s204 = ssub.s32 512, 512
          %205 = vsyncadd %s198, %s204
          %s206 = sadd.s32 %s25, %s202
          %s207 = smul.addr %s23, 4
          %s208 = sadd.s32 %s206, %s207
          %s209 = smul.addr %s208, 128
          %s210 = scalar_lea.hbm %s1, %s209
          %s211 = sshll.u32 %s201, 4
          %s212 = int_to_ptr.vmem [resolvable:$true] %s211
          %217 = dma.hbm_to_vmem [thread:$0]  %s210, 512, %s212, %s198, 128, 128, 8
        $region24: #{tpu_custom_call.1} parent=19 // pred_fallthru
          _
        // Predicated region
        $region25: #{tpu_custom_call.1} parent=19 // pred_check
          %p218 = pneg %p122
        $region26: #{tpu_custom_call.1} parent=19 // pred_check_branch
          %220 = sbr.rel (%p218) target = $region28
        $region27: #{tpu_custom_call.1} parent=19 // pred_region
          %p221 = scmp.lt.s32.totalorder %s23, 2
          %s222 = scalar_select %p221, %s23, 2
          %p223 = scmp.lt.s32.totalorder %s25, 0
          %s224 = scalar_select %p223, %s25, 0
          %s225 = sadd.s32 %s224, %s222
          %s226 = scalar_lea.vmem %s2, %s225
        $region28: #{tpu_custom_call.1} parent=19 // pred_fallthru
          _
      $region20: #{tpu_custom_call.1} parent=5 // pred_fallthru
        _
      %p227 = scmp.le.s32.totalorder 1, %s16
      %p228 = scmp.lt.s32.totalorder %s16, 4
      %p229 = pnand %p227, %p228
      %p230 = pneg %p229
      // Predicated region
      $region29: #{tpu_custom_call.1} parent=5 // pred_check
        _
      $region30: #{tpu_custom_call.1} parent=5 // pred_check_branch
        %232 = sbr.rel (%p229) target = $region32
      $region31: #{tpu_custom_call.1} parent=5 // pred_region
        %s233 = ssub.s32 %s16, 1
        // Predicated region
        $region33: #{tpu_custom_call.1} parent=31 // pred_check
          %p234 = pneg %p70
        $region34: #{tpu_custom_call.1} parent=31 // pred_check_branch
          %236 = sbr.rel (%p234) target = $region36
        $region35: #{tpu_custom_call.1} parent=31 // pred_region
          %237 = dma.done [#allocation4], 256
        $region36: #{tpu_custom_call.1} parent=31 // pred_fallthru
          _
        %s238 = sand.u32 %s87, 1
        %s239 = scalar_lea.sflag [#allocation7], %s238
        %s240 = sand.u32 %s87, 1
        %s241 = smul.addr %s240, 32
        %s242 = scalar_lea.vmem [#allocation6], %s241
        // Predicated region
        $region37: #{tpu_custom_call.1} parent=31 // pred_check
          %p243 = pneg %p100
        $region38: #{tpu_custom_call.1} parent=31 // pred_check_branch
          %245 = sbr.rel (%p243) target = $region40
        $region39: #{tpu_custom_call.1} parent=31 // pred_region
          %246 = dma.done %s239, 512
        $region40: #{tpu_custom_call.1} parent=31 // pred_fallthru
          _
        %p247 = pneg %p70
        %p248 = pneg %p67
        %s249 = sand.u32 %s87, 1
        %s250 = scalar_lea.sflag [#allocation7], %s249
        %s251 = sand.u32 %s87, 1
        %s252 = smul.addr %s251, 32
        %s253 = scalar_lea.vmem [#allocation6], %s252
        %p254 = pneg %p100
        %p255 = pneg %p97
        %p256 = scmp.lt.s32.totalorder %s27, 2
        %s257 = scalar_select %p256, %s27, 2
        %p258 = scmp.lt.s32.totalorder %s29, 0
        %s259 = scalar_select %p258, %s29, 0
        %s260 = sadd.s32 %s259, %s257
        %s261 = scalar_lea.vmem %s2, %s260
        %p262 = pneg %p128
        %p263 = pneg %p125
        %p264 = pneg %p158
        %p265 = pneg %p155
        %s266 = sand.u32 %s145, 1
        %s267 = scalar_lea.sflag [#allocation5], %s266
        %s268 = sand.u32 %s145, 1
        %s269 = smul.addr %s268, 16
        %s270 = scalar_lea.vmem [#allocation8], %s269
        %s271 = smul.u32 2, %s28
        %s272 = smul.u32 4, %s30
        %p273 = scmp.lt.s32.totalorder %s27, 2
        %s274 = scalar_select %p273, %s27, 2
        %p275 = scmp.lt.s32.totalorder %s29, 0
        %s276 = scalar_select %p275, %s29, 0
        %s277 = sadd.s32 %s276, %s274
        %s278 = scalar_lea.vmem %s2, %s277
        %s279 = smul.u32 2, %s28
        %p281 = scmp.eq.s32.totalorder %s30, 0
        // Predicated region
        $region41: #{tpu_custom_call.1} parent=31 // pred_check
          %p282 = pneg %p281
        $region42: #{tpu_custom_call.1} parent=31 // pred_check_branch
          %284 = sbr.rel (%p282) target = $region44
        $region43: #{tpu_custom_call.1} parent=31 // pred_region
          %vm285 = vcmask 261120
          %286 = vst.msk [vmem:[#allocation2] sm:$0xff] %vm285, 0.0
          %287 = vst.msk [vmem:[#allocation2 + $0x8] sm:$0xff] %vm285, 0.0
        $region44: #{tpu_custom_call.1} parent=31 // pred_fallthru
          _
        %v288 = vld [vmem:[#allocation2] sm:$0xff]
        %v289 = vld [vmem:[#allocation2 + $0x8] sm:$0xff]
        %v290 = vld [vmem:[#allocation3] sm:$0xff]
        %v291 = vld [vmem:[#allocation3 + $0x8] sm:$0xff]
        %v292 = vpack.c.bf16 %v291, %v290
        %v293 = vld [vmem:[%s242] sm:$0xff]
        %v294 = vld [vmem:[%s242 + $0x8] sm:$0xff]
        %v295 = vld [vmem:[%s242 + $0x10] sm:$0xff]
        %v296 = vld [vmem:[%s242 + $0x18] sm:$0xff]
        %v297 = vpack.c.bf16 %v294, %v293
        %v298 = vpack.c.bf16 %v296, %v295
        %vm299 = vcmask 261120
        %v301 = vsel %vm299, %v292, 0
        %303 = vmatprep.subr.bf16.mxu0 0
        %304 = vmatpush1.bf16.msra.mxu0 %v297
        %305 = vmatprep.subr.bf16.mxu0 0
        %306 = vmatpush1.bf16.msra.mxu0 %v298
        %307 = vmatprep.subr.bf16.mxu0 0
        %308 = vmatpush1.bf16.msra.mxu0 0
        %309 = vmatprep.subr.bf16.mxu0 0
        %310 = vmatpush1.bf16.msra.mxu0 0
        %311 = vmatprep.subr.bf16.mxu0 0
        %312 = vmatpush1.bf16.msra.mxu0 0
        %313 = vmatprep.subr.bf16.mxu0 0
        %314 = vmatpush1.bf16.msra.mxu0 0
        %315 = vmatprep.subr.bf16.mxu0 0
        %316 = vmatpush1.bf16.msra.mxu0 0
        %317 = vmatprep.subr.bf16.mxu0 0
        %318 = vmatpush1.bf16.msra.mxu0 0
        %319 = vmatprep.subr.bf16.mxu0 0
        %320 = vmatpush1.bf16.msra.mxu0 0
        %321 = vmatprep.subr.bf16.mxu0 0
        %322 = vmatpush1.bf16.msra.mxu0 0
        %323 = vmatprep.subr.bf16.mxu0 0
        %324 = vmatpush1.bf16.msra.mxu0 0
        %325 = vmatprep.subr.bf16.mxu0 0
        %326 = vmatpush1.bf16.msra.mxu0 0
        %327 = vmatprep.subr.bf16.mxu0 0
        %328 = vmatpush1.bf16.msra.mxu0 0
        %329 = vmatprep.subr.bf16.mxu0 0
        %330 = vmatpush1.bf16.msra.mxu0 0
        %331 = vmatprep.subr.bf16.mxu0 0
        %332 = vmatpush1.bf16.msra.mxu0 0
        %333 = vmatprep.subr.bf16.mxu0 0
        %334 = vmatpush1.bf16.msra.mxu0 0
        %335 = vmatprep.mubr.bf16.mxu0 0
        %336 = vmatmul.mubr.bf16.gmra.mrb[0].mxu0 %v301
        %v337 = vpop.f32.mrb[0].mxu0
        %v338 = vadd.f32 0.0, %v337
        %v339 = vpop.f32.mrb[0].mxu0
        %v340 = vpop.f32.mrb[0].mxu0
        %v341 = vadd.f32 0.0, %v340
        %v342 = vpop.f32.mrb[0].mxu0
        %343 = vdwg.mxu0
        %v344 = vadd.f32 %v288, %v338
        %v345 = vadd.f32 %v289, %v341
        %346 = vst.msk [vmem:[#allocation2] sm:$0xff] %vm299, %v344
        %347 = vst.msk [vmem:[#allocation2 + $0x8] sm:$0xff] %vm299, %v345
        // Predicated region
        $region45: #{tpu_custom_call.1} parent=31 // pred_check
          %p348 = pneg %p281
        $region46: #{tpu_custom_call.1} parent=31 // pred_check_branch
          %350 = sbr.rel (%p348) target = $region48
        $region47: #{tpu_custom_call.1} parent=31 // pred_region
          %v351 = vld [vmem:[#allocation2] sm:$0xff]
          %v352 = vld [vmem:[#allocation2 + $0x8] sm:$0xff]
          %v353 = vld [vmem:[%s278] sm:$0x1]
          %v355 = vlaneseq
          %v356 = vshrl.u32 %v355, 7
          %v357 = vsub.s32 0, %v356
          %v358 = vrot.slane %v353, %v357
          %v360 = vadd.f32 %v351, %v358
          %v361 = vadd.f32 %v352, %v358
          %362 = vst.msk [vmem:[%s270] sm:$0xff] %vm299, %v360
          %363 = vst.msk [vmem:[%s270 + $0x8] sm:$0xff] %vm299, %v361
        $region48: #{tpu_custom_call.1} parent=31 // pred_fallthru
          _
        %s364 = sand.u32 %s145, 1
        %s365 = scalar_lea.sflag [#allocation5], %s364
        %s366 = sand.u32 %s145, 1
        %s367 = smul.addr %s366, 16
        %s368 = scalar_lea.vmem [#allocation8], %s367
        // Predicated region
        $region49: #{tpu_custom_call.1} parent=31 // pred_check
          %p369 = pneg %p155
        $region50: #{tpu_custom_call.1} parent=31 // pred_check_branch
          %371 = sbr.rel (%p369) target = $region52
        $region51: #{tpu_custom_call.1} parent=31 // pred_region
          %s372 = smul.u32 2, %s28
          %s374 = ssub.s32 256, 256
          %375 = vsyncadd %s365, %s374
          %s376 = sadd.s32 %s29, %s372
          %s377 = smul.addr %s27, 2
          %s378 = sadd.s32 %s376, %s377
          %s379 = smul.addr %s378, 128
          %s380 = scalar_lea.hbm %s3, %s379
          %s381 = sshll.u32 %s368, 4
          %s382 = int_to_ptr.vmem [resolvable:$true] %s381
          %387 = dma.vmem_to_hbm [thread:$0]  %s382, 256, %s380, %s365, 128, 128, 8
        $region52: #{tpu_custom_call.1} parent=31 // pred_fallthru
          _
      $region32: #{tpu_custom_call.1} parent=5 // pred_fallthru
        _
      %p388 = scmp.le.s32.totalorder 2, %s16
      // Predicated region
      $region53: #{tpu_custom_call.1} parent=5 // pred_check
        %p389 = pneg %p388
      $region54: #{tpu_custom_call.1} parent=5 // pred_check_branch
        %391 = sbr.rel (%p389) target = $region56
      $region55: #{tpu_custom_call.1} parent=5 // pred_region
        %s392 = ssub.s32 %s16, 2
        // Predicated region
        $region57: #{tpu_custom_call.1} parent=55 // pred_check
          %p393 = pneg %p161
        $region58: #{tpu_custom_call.1} parent=55 // pred_check_branch
          %395 = sbr.rel (%p393) target = $region60
        $region59: #{tpu_custom_call.1} parent=55 // pred_region
          %s396 = sand.u32 %s146, 1
          %s397 = scalar_lea.sflag [#allocation5], %s396
          %s398 = sand.u32 %s146, 1
          %s399 = smul.addr %s398, 16
          %s400 = scalar_lea.vmem [#allocation8], %s399
          %401 = dma.done %s397, 256
        $region60: #{tpu_custom_call.1} parent=55 // pred_fallthru
          _
      $region56: #{tpu_custom_call.1} parent=5 // pred_fallthru
        _
    $region6: #{tpu_custom_call.1} parent=1 // loop_footer
      %s20 = sadd.s32 1, %s16
    $region7: #{tpu_custom_call.1} parent=1 // loop_footer_branch
      %15 = sbr.rel target = $region3
    $region8: #{tpu_custom_call.1} parent=1 // loop_exit
      _
    %402 = vsyncpa [#allocation4], 1
    %s403 = scalar_lea.sflag [#allocation4], 1
    %404 = vsyncpa %s403, 1
    %405 = vsyncpa [#allocation7], 1
    %s406 = scalar_lea.sflag [#allocation7], 1
    %407 = vsyncpa %s406, 1
    %408 = vsyncpa [#allocation5], 1
    %s409 = scalar_lea.sflag [#allocation5], 1
    %410 = vsyncpa %s409, 1

</llo_original>
